<compile_context>
chip_gen: v5e
topology: v5e:2x2
jax: 0.10.0
libtpu: 0.0.40
codegen_flags: <defaults>
</compile_context>

<pallas_src>
import math
import functools

import jax
import jax.numpy as jnp
from jax.experimental import pallas as pl
from jax.experimental.pallas import tpu as pltpu

BN_EPS = 1e-5
LANE = 128

_COMPILER_PARAMS = pltpu.CompilerParams(
    dimension_semantics=("parallel",),
    vmem_limit_bytes=32 * 1024 * 1024,
)


def _rup(x, m=LANE):
    return ((x + m - 1) // m) * m


# ------------------------------ Pallas kernels -------------------------------

def _matmul_bn_kernel(x_ref, w_ref, s_ref, b_ref, o_ref, *, relu):
    # (tm, K) @ (K, N) on the MXU (bf16 inputs, f32 accumulation), fused BN(+ReLU).
    acc = jnp.dot(x_ref[...], w_ref[...], preferred_element_type=jnp.float32)
    acc = acc * s_ref[...] + b_ref[...]
    if relu:
        acc = jnp.maximum(acc, 0.0)
    o_ref[...] = acc.astype(o_ref.dtype)


@functools.partial(jax.jit, static_argnames=("relu",))
def matmul_bn(x, w, scale, bias, relu=True):
    m, k = x.shape
    n_out = w.shape[1]
    tm = 256 if m >= 256 else _rup(m, 8)
    m_pad = _rup(m, tm)
    xp = jnp.pad(x, ((0, m_pad - m), (0, 0))) if m_pad != m else x
    kern = functools.partial(_matmul_bn_kernel, relu=relu)
    out = pl.pallas_call(
        kern,
        out_shape=jax.ShapeDtypeStruct((m_pad, n_out), jnp.bfloat16),
        grid=(m_pad // tm,),
        in_specs=[
            pl.BlockSpec((tm, k), lambda i: (i, 0)),
            pl.BlockSpec((k, n_out), lambda i: (0, 0)),
            pl.BlockSpec((1, n_out), lambda i: (0, 0)),
            pl.BlockSpec((1, n_out), lambda i: (0, 0)),
        ],
        out_specs=pl.BlockSpec((tm, n_out), lambda i: (i, 0)),
        compiler_params=_COMPILER_PARAMS,
    )(xp, w, scale, bias)
    return out[:m] if m_pad != m else out


def _ires_kernel(x_ref, w1_ref, s1_ref, b1_ref, wd_ref, s2_ref, b2_ref,
                 w2_ref, s3_ref, b3_ref, out_ref, *rest,
                 h, w, stride, use_res, want_feats):
    # Fused inverted-residual layer for one batch element.
    # x_ref is (1, h*w, Cin_p) bf16 (spatially flattened).
    if want_feats:
        pw_ref, dwf_ref, pad_ref, dwm_ref = rest
    else:
        pad_ref, dwm_ref = rest
    chid = w1_ref.shape[1]
    ho, wo = h // stride, w // stride
    mo = ho * wo

    # ---- 1x1 expand (MXU, bf16 x bf16 -> f32) + BN + ReLU ----
    hid = jnp.dot(x_ref[0], w1_ref[...], preferred_element_type=jnp.float32)
    hid = jnp.maximum(hid * s1_ref[...] + b1_ref[...], 0.0)          # (h*w, chid) f32
    if want_feats:
        pw_ref[0] = hid.astype(pw_ref.dtype)

    # ---- fill halo scratch: zero only the 1-wide border, one bulk interior store ----
    pad_ref[pl.ds(0, 1), :, :] = jnp.zeros((1, w + 2, chid), jnp.float32)
    pad_ref[pl.ds(h + 1, 1), :, :] = jnp.zeros((1, w + 2, chid), jnp.float32)
    pad_ref[pl.ds(1, h), pl.ds(0, 1), :] = jnp.zeros((h, 1, chid), jnp.float32)
    pad_ref[pl.ds(1, h), pl.ds(w + 1, 1), :] = jnp.zeros((h, 1, chid), jnp.float32)
    pad_ref[pl.ds(1, h), pl.ds(1, w), :] = hid.reshape(h, w, chid)

    # ---- depthwise 3x3, pad=1 (VPU, f32) + BN + ReLU, row-blocked accumulator ----
    # Stride-2: subsample only along the leading h axis here (free); columns are
    # subsampled once below with a single strided read of the finished result.
    wd = wd_ref[...]                                                 # (9, chid) f32
    rpb = max(1, min(ho, 65536 // (w * chid * 4)))                   # acc <= ~64 KiB
    for ro in range(0, ho, rpb):
        rb = min(rpb, ho - ro)
        acc = None
        for dh in range(3):
            if stride == 1:
                rows = pl.ds(ro + dh, rb)
            else:
                rows = pl.ds(ro * stride + dh, rb, stride)
            for dwc in range(3):
                tap = pad_ref[rows, pl.ds(dwc, w), :]                # (rb, w, chid)
                term = tap * wd[dh * 3 + dwc:dh * 3 + dwc + 1]
                acc = term if acc is None else acc + term
        acc = jnp.maximum(acc * s2_ref[...] + b2_ref[...], 0.0)
        dwm_ref[pl.ds(ro, rb), :, :] = acc.astype(dwm_ref.dtype)

    if stride == 1:
        dm = dwm_ref[...]                                            # (ho, w, chid) bf16
    else:
        dm = dwm_ref[:, pl.ds(0, wo, stride), :]                     # one strided read
    dm = dm.reshape(mo, chid)
    if want_feats:
        dwf_ref[0] = dm.astype(dwf_ref.dtype)

    # ---- 1x1 project (MXU) + BN (+ fused residual add) ----
    o = jnp.dot(dm, w2_ref[...], preferred_element_type=jnp.float32)
    o = o * s3_ref[...] + b3_ref[...]
    if use_res:
        o = o + x_ref[0].astype(jnp.float32)
    out_ref[0] = o.astype(out_ref.dtype)


@functools.partial(jax.jit,
                   static_argnames=("h", "w", "stride", "use_res", "want_feats"))
def inverted_residual(x, w1, s1, b1, wd, s2, b2, w2, s3, b3, *,
                      h, w, stride, use_res, want_feats=False):
    n, m, cin_p = x.shape
    assert m == h * w and h % stride == 0 and w % stride == 0
    chid_p = w1.shape[1]
    cout_p = w2.shape[1]
    ho, wo = h // stride, w // stride
    mo = ho * wo

    kern = functools.partial(_ires_kernel, h=h, w=w, stride=stride,
                             use_res=use_res, want_feats=want_feats)
    main_shape = jax.ShapeDtypeStruct((n, mo, cout_p), jnp.bfloat16)
    main_spec = pl.BlockSpec((1, mo, cout_p), lambda b: (b, 0, 0))
    if want_feats:
        out_shape = (main_shape,
                     jax.ShapeDtypeStruct((n, m, chid_p), jnp.bfloat16),
                     jax.ShapeDtypeStruct((n, mo, chid_p), jnp.bfloat16))
        out_specs = (main_spec,
                     pl.BlockSpec((1, m, chid_p), lambda b: (b, 0, 0)),
                     pl.BlockSpec((1, mo, chid_p), lambda b: (b, 0, 0)))
    else:
        out_shape = main_shape
        out_specs = main_spec

    return pl.pallas_call(
        kern,
        out_shape=out_shape,
        grid=(n,),
        in_specs=[
            pl.BlockSpec((1, m, cin_p), lambda b: (b, 0, 0)),
            pl.BlockSpec((cin_p, chid_p), lambda b: (0, 0)),
            pl.BlockSpec((1, chid_p), lambda b: (0, 0)),
            pl.BlockSpec((1, chid_p), lambda b: (0, 0)),
            pl.BlockSpec((9, chid_p), lambda b: (0, 0)),
            pl.BlockSpec((1, chid_p), lambda b: (0, 0)),
            pl.BlockSpec((1, chid_p), lambda b: (0, 0)),
            pl.BlockSpec((chid_p, cout_p), lambda b: (0, 0)),
            pl.BlockSpec((1, cout_p), lambda b: (0, 0)),
            pl.BlockSpec((1, cout_p), lambda b: (0, 0)),
        ],
        out_specs=out_specs,
        scratch_shapes=[pltpu.VMEM((h + 2, w + 2, chid_p), jnp.float32),
                        pltpu.VMEM((ho, w, chid_p), jnp.bfloat16)],
        compiler_params=_COMPILER_PARAMS,
    )(x, w1, s1, b1, wd, s2, b2, w2, s3, b3)


def _head_kernel(x_ref, w_ref, s_ref, b_ref, wc_ref, bc_ref, *refs, want_feats):
    # conv2 (1x1) + BN + ReLU + global avg-pool + classifier, fused per batch element.
    if want_feats:
        feat_ref, logit_ref = refs
    else:
        (logit_ref,) = refs
    xm = x_ref[0]                                                    # (h*w, cin_p) bf16
    a = jnp.dot(xm, w_ref[...], preferred_element_type=jnp.float32)
    a = jnp.maximum(a * s_ref[...] + b_ref[...], 0.0)
    if want_feats:
        feat_ref[0] = a.astype(feat_ref.dtype)
    pooled = jnp.mean(a, axis=0, keepdims=True)                      # AvgPool2d(H) == mean
    lg = jnp.dot(pooled.astype(jnp.bfloat16), wc_ref[...],
                 preferred_element_type=jnp.float32) + bc_ref[...]
    logit_ref[0] = lg


@functools.partial(jax.jit, static_argnames=("want_feats",))
def head_forward(x, conv2_w, conv2_s, conv2_b, cls_w, cls_b, want_feats=False):
    n, m, cin_p = x.shape
    clast = conv2_w.shape[1]
    fdim_p = cls_w.shape[1]
    kern = functools.partial(_head_kernel, want_feats=want_feats)
    logit_shape = jax.ShapeDtypeStruct((n, 1, fdim_p), jnp.float32)
    logit_spec = pl.BlockSpec((1, 1, fdim_p), lambda b: (b, 0, 0))
    if want_feats:
        out_shape = (jax.ShapeDtypeStruct((n, m, clast), jnp.bfloat16), logit_shape)
        out_specs = (pl.BlockSpec((1, m, clast), lambda b: (b, 0, 0)), logit_spec)
    else:
        out_shape = logit_shape
        out_specs = logit_spec
    return pl.pallas_call(
        kern,
        out_shape=out_shape,
        grid=(n,),
        in_specs=[
            pl.BlockSpec((1, m, cin_p), lambda b: (b, 0, 0)),
            pl.BlockSpec((cin_p, clast), lambda b: (0, 0)),
            pl.BlockSpec((1, clast), lambda b: (0, 0)),
            pl.BlockSpec((1, clast), lambda b: (0, 0)),
            pl.BlockSpec((clast, fdim_p), lambda b: (0, 0)),
            pl.BlockSpec((1, fdim_p), lambda b: (0, 0)),
        ],
        out_specs=out_specs,
        compiler_params=_COMPILER_PARAMS,
    )(x, conv2_w, conv2_s, conv2_b, cls_w, cls_b)


# --------------------------- parameter construction --------------------------

def _conv_init(key, cout, cin, kh, kw):
    std = math.sqrt(2.0 / (kh * kw * cout))
    return std * jax.random.normal(key, (cout, cin, kh, kw), dtype=jnp.float32)


def _bn_fold(c, c_p):
    gamma = jnp.ones((c,), jnp.float32)
    beta = jnp.zeros((c,), jnp.float32)
    mean = jnp.zeros((c,), jnp.float32)
    var = jnp.ones((c,), jnp.float32)
    scale = gamma / jnp.sqrt(var + BN_EPS)
    bias = beta - mean * scale
    sp = jnp.ones((1, c_p), jnp.float32).at[0, :c].set(scale)   # pad scale with 1
    bp = jnp.zeros((1, c_p), jnp.float32).at[0, :c].set(bias)   # pad bias with 0
    return sp, bp


def _pad_mat(m, rows, cols, dtype):
    out = jnp.zeros((rows, cols), jnp.float32).at[:m.shape[0], :m.shape[1]].set(m)
    return out.astype(dtype)


def build_params(key, T, feature_dim, input_size=32, self_width_mult=0.5):
    assert input_size % 32 == 0
    width_mult = 1.0                       # width_mult_list = [1.0]
    settings = [[1, 16, 1, 1], [T, 24, 2, 1], [T, 32, 3, 2], [T, 64, 4, 2],
                [T, 96, 3, 1], [T, 160, 3, 2], [T, 320, 1, 1]]
    keys = iter(jax.random.split(key, 256))
    params = {}

    in_ch = int(32 * self_width_mult * width_mult)
    in_ch_p = _rup(in_ch)
    w = _conv_init(next(keys), in_ch, 3, 3, 3)
    wm = jnp.transpose(w, (2, 3, 1, 0)).reshape(9 * 3, in_ch)    # (27, Cout)
    params['stem_w'] = _pad_mat(wm, 32, in_ch_p, jnp.bfloat16)   # K 27 -> 32, Cout -> 128
    params['stem_s'], params['stem_b'] = _bn_fold(in_ch, in_ch_p)

    layers = []
    cur, cur_p = in_ch, in_ch_p
    for t, c, nrep, s in settings:
        out_ch = int(c * self_width_mult * width_mult)
        out_p = _rup(out_ch)
        for stride in [s] + [1] * (nrep - 1):
            hid = cur * t
            hid_p = _rup(hid)
            w1 = _conv_init(next(keys), hid, cur, 1, 1)[:, :, 0, 0]     # (hid, cur)
            wd = _conv_init(next(keys), hid, 1, 3, 3)                   # (hid, 1, 3, 3)
            w2 = _conv_init(next(keys), out_ch, hid, 1, 1)[:, :, 0, 0]  # (out, hid)
            lw = {
                'w1': _pad_mat(w1.T, cur_p, hid_p, jnp.bfloat16),
                'wd': _pad_mat(jnp.transpose(wd[:, 0], (1, 2, 0)).reshape(9, hid),
                               9, hid_p, jnp.float32),
                'w2': _pad_mat(w2.T, hid_p, out_p, jnp.bfloat16),
                'stride': stride,
                'use_res': bool(stride == 1 and cur == out_ch),
                'chid': hid,
                'cout': out_ch,
            }
            lw['s1'], lw['b1'] = _bn_fold(hid, hid_p)
            lw['s2'], lw['b2'] = _bn_fold(hid, hid_p)
            lw['s3'], lw['b3'] = _bn_fold(out_ch, out_p)
            layers.append(lw)
            cur, cur_p = out_ch, out_p
    params['layers'] = layers

    last = int((int(1280 * self_width_mult) if self_width_mult > 1.0 else 1280)
               * width_mult)
    last_p = _rup(last)
    w2c = _conv_init(next(keys), last, cur, 1, 1)[:, :, 0, 0]
    params['conv2_w'] = _pad_mat(w2c.T, cur_p, last_p, jnp.bfloat16)
    params['conv2_s'], params['conv2_b'] = _bn_fold(last, last_p)

    fdim_p = _rup(feature_dim)
    cls_w = 0.01 * jax.random.normal(next(keys), (feature_dim, last), jnp.float32)
    params['cls_w'] = _pad_mat(cls_w.T, last_p, fdim_p, jnp.bfloat16)
    params['cls_b'] = jnp.zeros((1, fdim_p), jnp.float32)

    params['meta'] = dict(stem_c=in_ch, last_c=last, feature_dim=feature_dim,
                          input_size=input_size)
    return params


# ---------------------------------- forward ----------------------------------

def od_mobilenet_v2_forward(params, x_nchw, return_features=False):
    """Mirrors ODMobileNetV2.forward(x, features).  Returns (logits, features).

    With return_features=False the per-layer conv_pw / conv_dw activations are
    kept entirely in VMEM and never written to HBM (fast path)."""
    meta = params['meta']
    n = x_nchw.shape[0]
    x = jnp.transpose(x_nchw, (0, 2, 3, 1))                  # NCHW -> NHWC
    features = []

    # ---- stem: 3x3/s2 conv + BN + ReLU  (tiny XLA im2col -> gridded bf16 matmul) ----
    h = w = meta['input_size'] // 2
    xp = jnp.pad(x, ((0, 0), (1, 1), (1, 1), (0, 0)))
    pats = [xp[:, dh:dh + 2 * h:2, dw:dw + 2 * w:2, :]
            for dh in range(3) for dw in range(3)]
    pat = jnp.concatenate(pats, axis=-1).reshape(n * h * w, 27)
    pat = jnp.pad(pat, ((0, 0), (0, params['stem_w'].shape[0] - 27)))
    out = matmul_bn(pat.astype(jnp.bfloat16), params['stem_w'],
                    params['stem_s'], params['stem_b'], relu=True)
    cp = out.shape[-1]
    if return_features:
        features.append(out.reshape(n, h, w, cp)[..., :meta['stem_c']])
    out = out.reshape(n, h * w, cp)        # flattened (N, H*W, Cpad) activations

    # ---- inverted residual blocks: one fused pallas_call per layer ----
    for lw in params['layers']:
        stride = lw['stride']
        ho, wo = h // stride, w // stride
        res = inverted_residual(out, lw['w1'], lw['s1'], lw['b1'], lw['wd'],
                                lw['s2'], lw['b2'], lw['w2'], lw['s3'], lw['b3'],
                                h=h, w=w, stride=stride, use_res=lw['use_res'],
                                want_feats=return_features)
        if return_features:
            out, pw, dwf = res
            features.append(pw.reshape(n, h, w, -1)[..., :lw['chid']])
            features.append(dwf.reshape(n, ho, wo, -1)[..., :lw['chid']])
        else:
            out = res
        h, w = ho, wo

    # ---- head: conv2 1x1 + BN + ReLU + global avgpool + classifier (fused) ----
    head_res = head_forward(out, params['conv2_w'], params['conv2_s'],
                            params['conv2_b'], params['cls_w'], params['cls_b'],
                            want_feats=return_features)
    if return_features:
        feat2, logits = head_res
        features.append(feat2.reshape(n, h, w, -1)[..., :meta['last_c']])
    else:
        logits = head_res
    logits = logits[:, 0, :meta['feature_dim']]
    return logits, features


# ------------------------------------ main ------------------------------------

if __name__ == "__main__":
    key = jax.random.PRNGKey(0)
    pkey, xkey = jax.random.split(key)

    T = 2
    feature_dim = 10
    input_size = 32          # input_size % 32 == 0 is asserted by the module
    batch = 2

    params = build_params(pkey, T=T, feature_dim=feature_dim,
                          input_size=input_size, self_width_mult=0.5)

    # PyTorch-convention NCHW input.
    x = jax.random.normal(xkey, (batch, 3, input_size, input_size), jnp.float32)

    logits, features = od_mobilenet_v2_forward(params, x, return_features=False)
    logits = jax.block_until_ready(logits)

    assert logits.shape == (batch, feature_dim), logits.shape
    assert bool(jnp.all(jnp.isfinite(logits)))
    print("KERNEL_OK")
</pallas_src>

<mosaic_0001>
module attributes {stable_mosaic.version = 11 : i64} {
  func.func @_matmul_bn_kernel(%arg0: i32, %arg1: memref<256x32xbf16, #tpu.memory_space<vmem>>, %arg2: memref<32x128xbf16, #tpu.memory_space<vmem>>, %arg3: memref<1x128xf32, #tpu.memory_space<vmem>>, %arg4: memref<1x128xf32, #tpu.memory_space<vmem>>, %arg5: memref<256x128xbf16, #tpu.memory_space<vmem>>) attributes {dimension_semantics = [#tpu.dimension_semantics<parallel>], iteration_bounds = array<i64: 2>, scalar_prefetch = 0 : i64, scratch_operands = 0 : i64, tpu.core_type = #tpu.core_type<tc>, window_params = [{transform_indices = @transform_0, window_bounds = array<i64: 256, 32>}, {pipeline_mode = #tpu.pipeline_mode<synchronous>, transform_indices = @transform_1, window_bounds = array<i64: 32, 128>}, {pipeline_mode = #tpu.pipeline_mode<synchronous>, transform_indices = @transform_2, window_bounds = array<i64: 1, 128>}, {pipeline_mode = #tpu.pipeline_mode<synchronous>, transform_indices = @transform_3, window_bounds = array<i64: 1, 128>}, {transform_indices = @transform_4, window_bounds = array<i64: 256, 128>}]} {
    %c0 = arith.constant 0 : index
    %c0_0 = arith.constant 0 : index
    %0 = vector.load %arg1[%c0, %c0_0] : memref<256x32xbf16, #tpu.memory_space<vmem>>, vector<256x32xbf16>
    %c0_1 = arith.constant 0 : index
    %c0_2 = arith.constant 0 : index
    %1 = vector.load %arg2[%c0_1, %c0_2] : memref<32x128xbf16, #tpu.memory_space<vmem>>, vector<32x128xbf16>
    %cst = arith.constant dense<0.000000e+00> : vector<256x128xf32>
    %2 = tpu.matmul %0, %1, %cst {dimension_numbers = #tpu.dot_dimension_numbers<[1], [0], [0], [1], [0, 0, 1, 1], [], []>} : vector<256x32xbf16>, vector<32x128xbf16>, vector<256x128xf32> -> vector<256x128xf32>
    %c0_3 = arith.constant 0 : index
    %c0_4 = arith.constant 0 : index
    %3 = vector.load %arg3[%c0_3, %c0_4] : memref<1x128xf32, #tpu.memory_space<vmem>>, vector<1x128xf32>
    %4 = vector.broadcast %3 : vector<1x128xf32> to vector<256x128xf32>
    %5 = arith.mulf %2, %4 : vector<256x128xf32>
    %c0_5 = arith.constant 0 : index
    %c0_6 = arith.constant 0 : index
    %6 = vector.load %arg4[%c0_5, %c0_6] : memref<1x128xf32, #tpu.memory_space<vmem>>, vector<1x128xf32>
    %7 = vector.broadcast %6 : vector<1x128xf32> to vector<256x128xf32>
    %8 = arith.addf %5, %7 : vector<256x128xf32>
    %cst_7 = arith.constant 0.000000e+00 : f32
    %9 = vector.broadcast %cst_7 : f32 to vector<256x128xf32>
    %10 = arith.maximumf %8, %9 : vector<256x128xf32>
    %11 = arith.truncf %10 : vector<256x128xf32> to vector<256x128xbf16>
    %c0_8 = arith.constant 0 : index
    %c0_9 = arith.constant 0 : index
    %12 = vector.load %arg5[%c0_8, %c0_9] : memref<256x128xbf16, #tpu.memory_space<vmem>>, vector<256x128xbf16>
    tpu.vector_store %arg5[%c0_8, %c0_9], %11 {strides = array<i32>} : memref<256x128xbf16, #tpu.memory_space<vmem>>, vector<256x128xbf16>,
    return
  }
  func.func @transform_0(%arg0: i32) -> (i32, i32) {
    %c0_i32 = arith.constant 0 : i32
    %c0_i32_0 = arith.constant 0 : i32
    return %arg0, %c0_i32 : i32, i32
  }
  func.func @transform_1(%arg0: i32) -> (i32, i32) {
    %c0_i32 = arith.constant 0 : i32
    %c0_i32_0 = arith.constant 0 : i32
    %c0_i32_1 = arith.constant 0 : i32
    return %c0_i32, %c0_i32_0 : i32, i32
  }
  func.func @transform_2(%arg0: i32) -> (i32, i32) {
    %c0_i32 = arith.constant 0 : i32
    %c0_i32_0 = arith.constant 0 : i32
    %c0_i32_1 = arith.constant 0 : i32
    return %c0_i32, %c0_i32_0 : i32, i32
  }
  func.func @transform_3(%arg0: i32) -> (i32, i32) {
    %c0_i32 = arith.constant 0 : i32
    %c0_i32_0 = arith.constant 0 : i32
    %c0_i32_1 = arith.constant 0 : i32
    return %c0_i32, %c0_i32_0 : i32, i32
  }
  func.func @transform_4(%arg0: i32) -> (i32, i32) {
    %c0_i32 = arith.constant 0 : i32
    %c0_i32_0 = arith.constant 0 : i32
    return %arg0, %c0_i32 : i32, i32
  }
}

</mosaic_0001>

<llo_original>
// kernel: matmul_bn.1
$region0: #{matmul_bn.1}
  #allocation0 [shape = 'u32[]', space=smem, size = 0x4, offset = 0x4, fixed_abs, tag = 'smem constant byte address 0x4 - core index']
  #allocation1 [shape = 'u32[72,128]{1,0:T(1,128)}', space=vmem, size = 0x9000, scoped, tag = 'internal scratch']
  %s0 = inlined_call_operand.vmem [shape: bf16[512,32], index: 0, kind: input, shape index: {}]
  %s1 = inlined_call_operand.vmem [shape: bf16[32,128], index: 1, kind: input, shape index: {}]
  %s2 = inlined_call_operand.vmem [shape: f32[1,128], index: 2, kind: input, shape index: {}]
  %s3 = inlined_call_operand.vmem [shape: f32[1,128], index: 3, kind: input, shape index: {}]
  %s4 = inlined_call_operand.hbm [shape: bf16[512,128], index: 4, kind: output, shape index: {}]
  %s5 = sld [smem:[#allocation0]]
  $region49: #{matmul_bn.1} parent=0
    _
  %s7 = ssub.s32 1, %s5
  %s8 = scalar_select 0, %s7, %s5
  $region1: #{matmul_bn.1} parent=0
    #allocation2 [shape = 'u8[131072]{0}', space=vmem, size = 0x20000, scoped, tag = 'output window, operand 0']
    #allocation3 [shape = 's32[2]{0}', space=sflag, size = 0x8, scoped, tag = 'scoped memory for matmul_bn.1']
    %9 = vsyncpa [#allocation3], 0
    %s10 = scalar_lea.sflag [#allocation3], 1
    %11 = vsyncpa %s10, 0
    loop: start=0, step=1, limit=4
    $region2: #{matmul_bn.1} parent=1 // loop_pre_header
      _
    $region3: #{matmul_bn.1} parent=1 // loop_header
      %s13 = sphi 0, %s17
      %p14 = scmp.ge.s32.totalorder %s13, 4
      %s23 = sphi 0, %s25
      %s26 = sphi 0, %s23
      %s27 = sphi 0, %s26
      %s43 = sphi 0, %s27
      %s47 = sphi 0, %s47
      %s49 = sphi 0, %s47
      %s50 = sphi 0, %s49
      %s64 = sphi 0, %s50
      %s68 = sphi 0, %s68
      %s70 = sphi 0, %s68
      %s71 = sphi 0, %s70
      %s85 = sphi 0, %s71
      %s89 = sphi 0, %s89
      %s91 = sphi 0, %s89
      %s92 = sphi 0, %s91
      %s106 = sphi 0, %s92
      %s112 = sphi 0, %s114
      %s115 = sphi 0, %s112
      %s116 = sphi 0, %s115
      %s132 = sphi 0, %s116
    $region4: #{matmul_bn.1} parent=1 // loop_header_branch
      %16 = sbr.rel (%p14) target = $region8
    $region5: #{matmul_bn.1} parent=1 // loop_body
      %s18 = ssub.s32 %s13, 1
      %s19 = ssub.s32 %s13, 2
      %s20 = sadd.s32 %s13, 1
      %s21 = ssub.s32 %s13, %s20
      %p22 = scmp.eq.s32.totalorder %s21, 0
      %s24 = sadd.s32 %s23, 1
      %s25 = scalar_select %p22, %s23, %s24
      %p28 = pneg %p22
      %p29 = scmp.eq.s32.totalorder %s13, 1
      %p30 = por %p28, %p29
      %p31 = scmp.ne.s32.totalorder %s23, %s26
      %p32 = scmp.eq.s32.totalorder %s13, 0
      %p33 = por %p31, %p32
      %p34 = scmp.ne.s32.totalorder %s23, %s26
      %p35 = scmp.eq.s32.totalorder %s18, 1
      %p36 = por %p34, %p35
      %p37 = scmp.ne.s32.totalorder %s26, %s27
      %p38 = scmp.eq.s32.totalorder %s18, 0
      %p39 = por %p37, %p38
      %p40 = scmp.ne.s32.totalorder %s26, %s27
      %p41 = scmp.eq.s32.totalorder %s19, 1
      %p42 = por %p40, %p41
      %p44 = scmp.ne.s32.totalorder %s27, %s43
      %p45 = scmp.eq.s32.totalorder %s19, 0
      %p46 = por %p44, %p45
      %s48 = sadd.s32 %s47, 1
      %p51 = scmp.eq.s32.totalorder %s13, 1
      %p52 = scmp.ne.s32.totalorder %s47, %s49
      %p53 = scmp.eq.s32.totalorder %s13, 0
      %p54 = por %p52, %p53
      %p55 = scmp.ne.s32.totalorder %s47, %s49
      %p56 = scmp.eq.s32.totalorder %s18, 1
      %p57 = por %p55, %p56
      %p58 = scmp.ne.s32.totalorder %s49, %s50
      %p59 = scmp.eq.s32.totalorder %s18, 0
      %p60 = por %p58, %p59
      %p61 = scmp.ne.s32.totalorder %s49, %s50
      %p62 = scmp.eq.s32.totalorder %s19, 1
      %p63 = por %p61, %p62
      %p65 = scmp.ne.s32.totalorder %s50, %s64
      %p66 = scmp.eq.s32.totalorder %s19, 0
      %p67 = por %p65, %p66
      %s69 = sadd.s32 %s68, 1
      %p72 = scmp.eq.s32.totalorder %s13, 1
      %p73 = scmp.ne.s32.totalorder %s68, %s70
      %p74 = scmp.eq.s32.totalorder %s13, 0
      %p75 = por %p73, %p74
      %p76 = scmp.ne.s32.totalorder %s68, %s70
      %p77 = scmp.eq.s32.totalorder %s18, 1
      %p78 = por %p76, %p77
      %p79 = scmp.ne.s32.totalorder %s70, %s71
      %p80 = scmp.eq.s32.totalorder %s18, 0
      %p81 = por %p79, %p80
      %p82 = scmp.ne.s32.totalorder %s70, %s71
      %p83 = scmp.eq.s32.totalorder %s19, 1
      %p84 = por %p82, %p83
      %p86 = scmp.ne.s32.totalorder %s71, %s85
      %p87 = scmp.eq.s32.totalorder %s19, 0
      %p88 = por %p86, %p87
      %s90 = sadd.s32 %s89, 1
      %p93 = scmp.eq.s32.totalorder %s13, 1
      %p94 = scmp.ne.s32.totalorder %s89, %s91
      %p95 = scmp.eq.s32.totalorder %s13, 0
      %p96 = por %p94, %p95
      %p97 = scmp.ne.s32.totalorder %s89, %s91
      %p98 = scmp.eq.s32.totalorder %s18, 1
      %p99 = por %p97, %p98
      %p100 = scmp.ne.s32.totalorder %s91, %s92
      %p101 = scmp.eq.s32.totalorder %s18, 0
      %p102 = por %p100, %p101
      %p103 = scmp.ne.s32.totalorder %s91, %s92
      %p104 = scmp.eq.s32.totalorder %s19, 1
      %p105 = por %p103, %p104
      %p107 = scmp.ne.s32.totalorder %s92, %s106
      %p108 = scmp.eq.s32.totalorder %s19, 0
      %p109 = por %p107, %p108
      %s110 = ssub.s32 %s13, %s20
      %p111 = scmp.eq.s32.totalorder %s110, 0
      %s113 = sadd.s32 %s112, 1
      %s114 = scalar_select %p111, %s112, %s113
      %p117 = pneg %p111
      %p118 = scmp.eq.s32.totalorder %s13, 1
      %p119 = por %p117, %p118
      %p120 = scmp.ne.s32.totalorder %s112, %s115
      %p121 = scmp.eq.s32.totalorder %s13, 0
      %p122 = por %p120, %p121
      %p123 = scmp.ne.s32.totalorder %s112, %s115
      %p124 = scmp.eq.s32.totalorder %s18, 1
      %p125 = por %p123, %p124
      %p126 = scmp.ne.s32.totalorder %s115, %s116
      %p127 = scmp.eq.s32.totalorder %s18, 0
      %p128 = por %p126, %p127
      %p129 = scmp.ne.s32.totalorder %s115, %s116
      %p130 = scmp.eq.s32.totalorder %s19, 1
      %p131 = por %p129, %p130
      %p133 = scmp.ne.s32.totalorder %s116, %s132
      %p134 = scmp.eq.s32.totalorder %s19, 0
      %p135 = por %p133, %p134
      %p136 = scmp.le.s32.totalorder 1, %s13
      %p137 = scmp.lt.s32.totalorder %s13, 3
      %p138 = pnand %p136, %p137
      %p139 = pneg %p138
      // Predicated region
      $region9: #{matmul_bn.1} parent=5 // pred_check
        _
      $region10: #{matmul_bn.1} parent=5 // pred_check_branch
        %141 = sbr.rel (%p138) target = $region12
      $region11: #{matmul_bn.1} parent=5 // pred_region
        %s142 = ssub.s32 %s13, 1
        // Predicated region
        $region13: #{matmul_bn.1} parent=11 // pred_check
          %p143 = pneg %p60
        $region14: #{matmul_bn.1} parent=11 // pred_check_branch
          %145 = sbr.rel (%p143) target = $region16
        $region15: #{matmul_bn.1} parent=11 // pred_region
          _
        $region16: #{matmul_bn.1} parent=11 // pred_fallthru
          _
        // Predicated region
        $region17: #{matmul_bn.1} parent=11 // pred_check
          %p146 = pneg %p81
        $region18: #{matmul_bn.1} parent=11 // pred_check_branch
          %148 = sbr.rel (%p146) target = $region20
        $region19: #{matmul_bn.1} parent=11 // pred_region
          _
        $region20: #{matmul_bn.1} parent=11 // pred_fallthru
          _
        // Predicated region
        $region21: #{matmul_bn.1} parent=11 // pred_check
          %p149 = pneg %p102
        $region22: #{matmul_bn.1} parent=11 // pred_check_branch
          %151 = sbr.rel (%p149) target = $region24
        $region23: #{matmul_bn.1} parent=11 // pred_region
          _
        $region24: #{matmul_bn.1} parent=11 // pred_fallthru
          _
      $region12: #{matmul_bn.1} parent=5 // pred_fallthru
        _
      %p152 = scmp.lt.s32.totalorder %s13, 2
      // Predicated region
      $region25: #{matmul_bn.1} parent=5 // pred_check
        %p153 = pneg %p152
      $region26: #{matmul_bn.1} parent=5 // pred_check_branch
        %155 = sbr.rel (%p153) target = $region28
      $region27: #{matmul_bn.1} parent=5 // pred_region
        // Predicated region
        $region29: #{matmul_bn.1} parent=27 // pred_check
          %p156 = pneg %p33
        $region30: #{matmul_bn.1} parent=27 // pred_check_branch
          %158 = sbr.rel (%p156) target = $region32
        $region31: #{matmul_bn.1} parent=27 // pred_region
          %s159 = smul.u32 32, %s13
          %p160 = scmp.lt.s32.totalorder %s159, 63
          %s161 = scalar_select %p160, %s159, 63
          %s162 = smul.addr %s161, 4
          %s163 = scalar_lea.vmem %s0, %s162
          %s164 = smul.u32 32, %s13
        $region32: #{matmul_bn.1} parent=27 // pred_fallthru
          _
      $region28: #{matmul_bn.1} parent=5 // pred_fallthru
        _
      %p165 = scmp.le.s32.totalorder 1, %s13
      %p166 = scmp.lt.s32.totalorder %s13, 3
      %p167 = pnand %p165, %p166
      %p168 = pneg %p167
      // Predicated region
      $region33: #{matmul_bn.1} parent=5 // pred_check
        _
      $region34: #{matmul_bn.1} parent=5 // pred_check_branch
        %170 = sbr.rel (%p167) target = $region36
      $region35: #{matmul_bn.1} parent=5 // pred_region
        %s171 = ssub.s32 %s13, 1
        %s172 = smul.u32 32, %s18
        %p173 = scmp.lt.s32.totalorder %s172, 63
        %s174 = scalar_select %p173, %s172, 63
        %s175 = smul.addr %s174, 4
        %s176 = scalar_lea.vmem %s0, %s175
        %p177 = pneg %p39
        %p178 = pneg %p36
        %p179 = pneg %p60
        %p180 = pneg %p57
        %p181 = pneg %p81
        %p182 = pneg %p78
        %p183 = pneg %p102
        %p184 = pneg %p99
        %p185 = pneg %p128
        %p186 = pneg %p125
        %s187 = sand.u32 %s115, 1
        %s188 = scalar_lea.sflag [#allocation3], %s187
        %s189 = sand.u32 %s115, 1
        %s190 = smul.addr %s189, 128
        %s191 = scalar_lea.vmem [#allocation2], %s190
        %s192 = smul.u32 32, %s18
        %p193 = scmp.lt.s32.totalorder %s192, 63
        %s194 = scalar_select %p193, %s192, 63
        %s195 = smul.addr %s194, 4
        %s196 = scalar_lea.vmem %s0, %s195
        %s197 = smul.u32 32, %s18
        %s198 = smul.u32 32, %s18
        %v200 = vld [vmem:[%s196] sm:$0xf]
        %v201 = vld [vmem:[%s196 + $0x4] sm:$0xf]
        %v202 = vld [vmem:[%s196 + $0x8] sm:$0xf]
        %v203 = vld [vmem:[%s196 + $0xc] sm:$0xf]
        %v204 = vld [vmem:[%s196 + $0x10] sm:$0xf]
        %v205 = vld [vmem:[%s196 + $0x14] sm:$0xf]
        %v206 = vld [vmem:[%s196 + $0x18] sm:$0xf]
        %v207 = vld [vmem:[%s196 + $0x1c] sm:$0xf]
        %v208 = vld [vmem:[%s196 + $0x20] sm:$0xf]
        %v209 = vld [vmem:[%s196 + $0x24] sm:$0xf]
        %v210 = vld [vmem:[%s196 + $0x28] sm:$0xf]
        %v211 = vld [vmem:[%s196 + $0x2c] sm:$0xf]
        %v212 = vld [vmem:[%s196 + $0x30] sm:$0xf]
        %v213 = vld [vmem:[%s196 + $0x34] sm:$0xf]
        %v214 = vld [vmem:[%s196 + $0x38] sm:$0xf]
        %v215 = vld [vmem:[%s196 + $0x3c] sm:$0xf]
        %v216 = vld [vmem:[%s196 + $0x40] sm:$0xf]
        %v217 = vld [vmem:[%s196 + $0x44] sm:$0xf]
        %v218 = vld [vmem:[%s196 + $0x48] sm:$0xf]
        %v219 = vld [vmem:[%s196 + $0x4c] sm:$0xf]
        %v220 = vld [vmem:[%s196 + $0x50] sm:$0xf]
        %v221 = vld [vmem:[%s196 + $0x54] sm:$0xf]
        %v222 = vld [vmem:[%s196 + $0x58] sm:$0xf]
        %v223 = vld [vmem:[%s196 + $0x5c] sm:$0xf]
        %v224 = vld [vmem:[%s196 + $0x60] sm:$0xf]
        %v225 = vld [vmem:[%s196 + $0x64] sm:$0xf]
        %v226 = vld [vmem:[%s196 + $0x68] sm:$0xf]
        %v227 = vld [vmem:[%s196 + $0x6c] sm:$0xf]
        %v228 = vld [vmem:[%s196 + $0x70] sm:$0xf]
        %v229 = vld [vmem:[%s196 + $0x74] sm:$0xf]
        %v230 = vld [vmem:[%s196 + $0x78] sm:$0xf]
        %v231 = vld [vmem:[%s196 + $0x7c] sm:$0xf]
        %v232 = vld [vmem:[%s1] sm:$0xf]
        %v233 = vld [vmem:[%s1 + $0x4] sm:$0xf]
        %v234 = vld [vmem:[%s1 + $0x8] sm:$0xf]
        %v235 = vld [vmem:[%s1 + $0xc] sm:$0xf]
        %v268 = vunpack.c.l.b16 %v200
        %v269 = vunpack.c.l.b16 %v201
        %v270 = vunpack.c.l.b16 %v202
        %v271 = vunpack.c.l.b16 %v203
        %v272 = vunpack.c.l.b16 %v204
        %v273 = vunpack.c.l.b16 %v205
        %v274 = vunpack.c.l.b16 %v206
        %v275 = vunpack.c.l.b16 %v207
        %v276 = vunpack.c.l.b16 %v208
        %v277 = vunpack.c.l.b16 %v209
        %v278 = vunpack.c.l.b16 %v210
        %v279 = vunpack.c.l.b16 %v211
        %v280 = vunpack.c.l.b16 %v212
        %v281 = vunpack.c.l.b16 %v213
        %v282 = vunpack.c.l.b16 %v214
        %v283 = vunpack.c.l.b16 %v215
        %v284 = vunpack.c.l.b16 %v216
        %v285 = vunpack.c.l.b16 %v217
        %v286 = vunpack.c.l.b16 %v218
        %v287 = vunpack.c.l.b16 %v219
        %v288 = vunpack.c.l.b16 %v220
        %v289 = vunpack.c.l.b16 %v221
        %v290 = vunpack.c.l.b16 %v222
        %v291 = vunpack.c.l.b16 %v223
        %v292 = vunpack.c.l.b16 %v224
        %v293 = vunpack.c.l.b16 %v225
        %v294 = vunpack.c.l.b16 %v226
        %v295 = vunpack.c.l.b16 %v227
        %v296 = vunpack.c.l.b16 %v228
        %v297 = vunpack.c.l.b16 %v229
        %v298 = vunpack.c.l.b16 %v230
        %v299 = vunpack.c.l.b16 %v231
        %v300 = vpack.c.b16 %v269, %v268
        %v301 = vpack.c.b16 %v271, %v270
        %v302 = vpack.c.b16 %v273, %v272
        %v303 = vpack.c.b16 %v275, %v274
        %v304 = vpack.c.b16 %v277, %v276
        %v305 = vpack.c.b16 %v279, %v278
        %v306 = vpack.c.b16 %v281, %v280
        %v307 = vpack.c.b16 %v283, %v282
        %v308 = vpack.c.b16 %v285, %v284
        %v309 = vpack.c.b16 %v287, %v286
        %v310 = vpack.c.b16 %v289, %v288
        %v311 = vpack.c.b16 %v291, %v290
        %v312 = vpack.c.b16 %v293, %v292
        %v313 = vpack.c.b16 %v295, %v294
        %v314 = vpack.c.b16 %v297, %v296
        %v315 = vpack.c.b16 %v299, %v298
        %v320 = vunpack.c.l.b16 %v232
        %v321 = vunpack.c.l.b16 %v233
        %v322 = vunpack.c.l.b16 %v234
        %v323 = vunpack.c.l.b16 %v235
        %v324 = vpack.c.b16 %v321, %v320
        %v325 = vpack.c.b16 %v323, %v322
        %vm328 = vcmask 261120
        %v330 = vsel %vm328, %v300, 0
        %v333 = vsel %vm328, %v301, 0
        %v336 = vsel %vm328, %v302, 0
        %v339 = vsel %vm328, %v303, 0
        %v342 = vsel %vm328, %v304, 0
        %v345 = vsel %vm328, %v305, 0
        %v348 = vsel %vm328, %v306, 0
        %v351 = vsel %vm328, %v307, 0
        %v354 = vsel %vm328, %v308, 0
        %v357 = vsel %vm328, %v309, 0
        %v360 = vsel %vm328, %v310, 0
        %v363 = vsel %vm328, %v311, 0
        %v366 = vsel %vm328, %v312, 0
        %v369 = vsel %vm328, %v313, 0
        %v372 = vsel %vm328, %v314, 0
        %v375 = vsel %vm328, %v315, 0
        %377 = vmatpush.bf16.msra.mxu0 0
        %378 = vmatpush.bf16.msra.mxu0 0
        %379 = vmatpush.bf16.msra.mxu0 0
        %380 = vmatpush.bf16.msra.mxu0 0
        %381 = vmatpush.bf16.msra.mxu0 0
        %382 = vmatpush.bf16.msra.mxu0 0
        %383 = vmatpush.bf16.msra.mxu0 %v325
        %384 = vmatpush.bf16.msra.mxu0 %v324
        %385 = vmatmul.bf16.gmra.mxu0 %v330
        %v386 = vpop.f32.mrf.mxu0
        %v387 = vadd.f32 0.0, %v386
        %v388 = vpop.f32.mrf.mxu0
        %v389 = vadd.f32 0.0, %v388
        %390 = vmatmul.bf16.gmra.mxu0 %v333
        %v391 = vpop.f32.mrf.mxu0
        %v392 = vadd.f32 0.0, %v391
        %v393 = vpop.f32.mrf.mxu0
        %v394 = vadd.f32 0.0, %v393
        %395 = vmatmul.bf16.gmra.mxu0 %v336
        %v396 = vpop.f32.mrf.mxu0
        %v397 = vadd.f32 0.0, %v396
        %v398 = vpop.f32.mrf.mxu0
        %v399 = vadd.f32 0.0, %v398
        %400 = vmatmul.bf16.gmra.mxu0 %v339
        %v401 = vpop.f32.mrf.mxu0
        %v402 = vadd.f32 0.0, %v401
        %v403 = vpop.f32.mrf.mxu0
        %v404 = vadd.f32 0.0, %v403
        %405 = vmatmul.bf16.gmra.mxu0 %v342
        %v406 = vpop.f32.mrf.mxu0
        %v407 = vadd.f32 0.0, %v406
        %v408 = vpop.f32.mrf.mxu0
        %v409 = vadd.f32 0.0, %v408
        %410 = vmatmul.bf16.gmra.mxu0 %v345
        %v411 = vpop.f32.mrf.mxu0
        %v412 = vadd.f32 0.0, %v411
        %v413 = vpop.f32.mrf.mxu0
        %v414 = vadd.f32 0.0, %v413
        %415 = vmatmul.bf16.gmra.mxu0 %v348
        %v416 = vpop.f32.mrf.mxu0
        %v417 = vadd.f32 0.0, %v416
        %v418 = vpop.f32.mrf.mxu0
        %v419 = vadd.f32 0.0, %v418
        %420 = vmatmul.bf16.gmra.mxu0 %v351
        %v421 = vpop.f32.mrf.mxu0
        %v422 = vadd.f32 0.0, %v421
        %v423 = vpop.f32.mrf.mxu0
        %v424 = vadd.f32 0.0, %v423
        %425 = vmatmul.bf16.gmra.mxu0 %v354
        %v426 = vpop.f32.mrf.mxu0
        %v427 = vadd.f32 0.0, %v426
        %v428 = vpop.f32.mrf.mxu0
        %v429 = vadd.f32 0.0, %v428
        %430 = vmatmul.bf16.gmra.mxu0 %v357
        %v431 = vpop.f32.mrf.mxu0
        %v432 = vadd.f32 0.0, %v431
        %v433 = vpop.f32.mrf.mxu0
        %v434 = vadd.f32 0.0, %v433
        %435 = vmatmul.bf16.gmra.mxu0 %v360
        %v436 = vpop.f32.mrf.mxu0
        %v437 = vadd.f32 0.0, %v436
        %v438 = vpop.f32.mrf.mxu0
        %v439 = vadd.f32 0.0, %v438
        %440 = vmatmul.bf16.gmra.mxu0 %v363
        %v441 = vpop.f32.mrf.mxu0
        %v442 = vadd.f32 0.0, %v441
        %v443 = vpop.f32.mrf.mxu0
        %v444 = vadd.f32 0.0, %v443
        %445 = vmatmul.bf16.gmra.mxu0 %v366
        %v446 = vpop.f32.mrf.mxu0
        %v447 = vadd.f32 0.0, %v446
        %v448 = vpop.f32.mrf.mxu0
        %v449 = vadd.f32 0.0, %v448
        %450 = vmatmul.bf16.gmra.mxu0 %v369
        %v451 = vpop.f32.mrf.mxu0
        %v452 = vadd.f32 0.0, %v451
        %v453 = vpop.f32.mrf.mxu0
        %v454 = vadd.f32 0.0, %v453
        %455 = vmatmul.bf16.gmra.mxu0 %v372
        %v456 = vpop.f32.mrf.mxu0
        %v457 = vadd.f32 0.0, %v456
        %v458 = vpop.f32.mrf.mxu0
        %v459 = vadd.f32 0.0, %v458
        %460 = vmatmul.bf16.gmra.mxu0 %v375
        %v461 = vpop.f32.mrf.mxu0
        %v462 = vadd.f32 0.0, %v461
        %v463 = vpop.f32.mrf.mxu0
        %v464 = vadd.f32 0.0, %v463
        %465 = vdwg.mxu0
        %v466 = vld [vmem:[%s2] sm:$0x1]
        %v468 = vperm.slane %v466, 0
        %v470 = vmul.f32 %v387, %v468
        %v471 = vmul.f32 %v389, %v468
        %v472 = vmul.f32 %v392, %v468
        %v473 = vmul.f32 %v394, %v468
        %v474 = vmul.f32 %v397, %v468
        %v475 = vmul.f32 %v399, %v468
        %v476 = vmul.f32 %v402, %v468
        %v477 = vmul.f32 %v404, %v468
        %v478 = vmul.f32 %v407, %v468
        %v479 = vmul.f32 %v409, %v468
        %v480 = vmul.f32 %v412, %v468
        %v481 = vmul.f32 %v414, %v468
        %v482 = vmul.f32 %v417, %v468
        %v483 = vmul.f32 %v419, %v468
        %v484 = vmul.f32 %v422, %v468
        %v485 = vmul.f32 %v424, %v468
        %v486 = vmul.f32 %v427, %v468
        %v487 = vmul.f32 %v429, %v468
        %v488 = vmul.f32 %v432, %v468
        %v489 = vmul.f32 %v434, %v468
        %v490 = vmul.f32 %v437, %v468
        %v491 = vmul.f32 %v439, %v468
        %v492 = vmul.f32 %v442, %v468
        %v493 = vmul.f32 %v444, %v468
        %v494 = vmul.f32 %v447, %v468
        %v495 = vmul.f32 %v449, %v468
        %v496 = vmul.f32 %v452, %v468
        %v497 = vmul.f32 %v454, %v468
        %v498 = vmul.f32 %v457, %v468
        %v499 = vmul.f32 %v459, %v468
        %v500 = vmul.f32 %v462, %v468
        %v501 = vmul.f32 %v464, %v468
        %v502 = vld [vmem:[%s3] sm:$0x1]
        %v504 = vperm.slane %v502, 0
        %v506 = vadd.f32 %v470, %v504
        %v507 = vadd.f32 %v471, %v504
        %v508 = vadd.f32 %v472, %v504
        %v509 = vadd.f32 %v473, %v504
        %v510 = vadd.f32 %v474, %v504
        %v511 = vadd.f32 %v475, %v504
        %v512 = vadd.f32 %v476, %v504
        %v513 = vadd.f32 %v477, %v504
        %v514 = vadd.f32 %v478, %v504
        %v515 = vadd.f32 %v479, %v504
        %v516 = vadd.f32 %v480, %v504
        %v517 = vadd.f32 %v481, %v504
        %v518 = vadd.f32 %v482, %v504
        %v519 = vadd.f32 %v483, %v504
        %v520 = vadd.f32 %v484, %v504
        %v521 = vadd.f32 %v485, %v504
        %v522 = vadd.f32 %v486, %v504
        %v523 = vadd.f32 %v487, %v504
        %v524 = vadd.f32 %v488, %v504
        %v525 = vadd.f32 %v489, %v504
        %v526 = vadd.f32 %v490, %v504
        %v527 = vadd.f32 %v491, %v504
        %v528 = vadd.f32 %v492, %v504
        %v529 = vadd.f32 %v493, %v504
        %v530 = vadd.f32 %v494, %v504
        %v531 = vadd.f32 %v495, %v504
        %v532 = vadd.f32 %v496, %v504
        %v533 = vadd.f32 %v497, %v504
        %v534 = vadd.f32 %v498, %v504
        %v535 = vadd.f32 %v499, %v504
        %v536 = vadd.f32 %v500, %v504
        %v537 = vadd.f32 %v501, %v504
        %v538 = vmax.f32 %v506, 0.0
        %v539 = vmax.f32 %v507, 0.0
        %v540 = vmax.f32 %v508, 0.0
        %v541 = vmax.f32 %v509, 0.0
        %v542 = vmax.f32 %v510, 0.0
        %v543 = vmax.f32 %v511, 0.0
        %v544 = vmax.f32 %v512, 0.0
        %v545 = vmax.f32 %v513, 0.0
        %v546 = vmax.f32 %v514, 0.0
        %v547 = vmax.f32 %v515, 0.0
        %v548 = vmax.f32 %v516, 0.0
        %v549 = vmax.f32 %v517, 0.0
        %v550 = vmax.f32 %v518, 0.0
        %v551 = vmax.f32 %v519, 0.0
        %v552 = vmax.f32 %v520, 0.0
        %v553 = vmax.f32 %v521, 0.0
        %v554 = vmax.f32 %v522, 0.0
        %v555 = vmax.f32 %v523, 0.0
        %v556 = vmax.f32 %v524, 0.0
        %v557 = vmax.f32 %v525, 0.0
        %v558 = vmax.f32 %v526, 0.0
        %v559 = vmax.f32 %v527, 0.0
        %v560 = vmax.f32 %v528, 0.0
        %v561 = vmax.f32 %v529, 0.0
        %v562 = vmax.f32 %v530, 0.0
        %v563 = vmax.f32 %v531, 0.0
        %v564 = vmax.f32 %v532, 0.0
        %v565 = vmax.f32 %v533, 0.0
        %v566 = vmax.f32 %v534, 0.0
        %v567 = vmax.f32 %v535, 0.0
        %v568 = vmax.f32 %v536, 0.0
        %v569 = vmax.f32 %v537, 0.0
        %v570 = vpack.c.bf16 %v538, %v538
        %v571 = vpack.c.bf16 %v539, %v539
        %v572 = vpack.c.bf16 %v540, %v540
        %v573 = vpack.c.bf16 %v541, %v541
        %v574 = vpack.c.bf16 %v542, %v542
        %v575 = vpack.c.bf16 %v543, %v543
        %v576 = vpack.c.bf16 %v544, %v544
        %v577 = vpack.c.bf16 %v545, %v545
        %v578 = vpack.c.bf16 %v546, %v546
        %v579 = vpack.c.bf16 %v547, %v547
        %v580 = vpack.c.bf16 %v548, %v548
        %v581 = vpack.c.bf16 %v549, %v549
        %v582 = vpack.c.bf16 %v550, %v550
        %v583 = vpack.c.bf16 %v551, %v551
        %v584 = vpack.c.bf16 %v552, %v552
        %v585 = vpack.c.bf16 %v553, %v553
        %v586 = vpack.c.bf16 %v554, %v554
        %v587 = vpack.c.bf16 %v555, %v555
        %v588 = vpack.c.bf16 %v556, %v556
        %v589 = vpack.c.bf16 %v557, %v557
        %v590 = vpack.c.bf16 %v558, %v558
        %v591 = vpack.c.bf16 %v559, %v559
        %v592 = vpack.c.bf16 %v560, %v560
        %v593 = vpack.c.bf16 %v561, %v561
        %v594 = vpack.c.bf16 %v562, %v562
        %v595 = vpack.c.bf16 %v563, %v563
        %v596 = vpack.c.bf16 %v564, %v564
        %v597 = vpack.c.bf16 %v565, %v565
        %v598 = vpack.c.bf16 %v566, %v566
        %v599 = vpack.c.bf16 %v567, %v567
        %v600 = vpack.c.bf16 %v568, %v568
        %v601 = vpack.c.bf16 %v569, %v569
        %602 = vst [vmem:[%s191] sm:$0xf] %v570
        %603 = vst [vmem:[%s191 + $0x4] sm:$0xf] %v571
        %604 = vst [vmem:[%s191 + $0x8] sm:$0xf] %v572
        %605 = vst [vmem:[%s191 + $0xc] sm:$0xf] %v573
        %606 = vst [vmem:[%s191 + $0x10] sm:$0xf] %v574
        %607 = vst [vmem:[%s191 + $0x14] sm:$0xf] %v575
        %608 = vst [vmem:[%s191 + $0x18] sm:$0xf] %v576
        %609 = vst [vmem:[%s191 + $0x1c] sm:$0xf] %v577
        %610 = vst [vmem:[%s191 + $0x20] sm:$0xf] %v578
        %611 = vst [vmem:[%s191 + $0x24] sm:$0xf] %v579
        %612 = vst [vmem:[%s191 + $0x28] sm:$0xf] %v580
        %613 = vst [vmem:[%s191 + $0x2c] sm:$0xf] %v581
        %614 = vst [vmem:[%s191 + $0x30] sm:$0xf] %v582
        %615 = vst [vmem:[%s191 + $0x34] sm:$0xf] %v583
        %616 = vst [vmem:[%s191 + $0x38] sm:$0xf] %v584
        %617 = vst [vmem:[%s191 + $0x3c] sm:$0xf] %v585
        %618 = vst [vmem:[%s191 + $0x40] sm:$0xf] %v586
        %619 = vst [vmem:[%s191 + $0x44] sm:$0xf] %v587
        %620 = vst [vmem:[%s191 + $0x48] sm:$0xf] %v588
        %621 = vst [vmem:[%s191 + $0x4c] sm:$0xf] %v589
        %622 = vst [vmem:[%s191 + $0x50] sm:$0xf] %v590
        %623 = vst [vmem:[%s191 + $0x54] sm:$0xf] %v591
        %624 = vst [vmem:[%s191 + $0x58] sm:$0xf] %v592
        %625 = vst [vmem:[%s191 + $0x5c] sm:$0xf] %v593
        %626 = vst [vmem:[%s191 + $0x60] sm:$0xf] %v594
        %627 = vst [vmem:[%s191 + $0x64] sm:$0xf] %v595
        %628 = vst [vmem:[%s191 + $0x68] sm:$0xf] %v596
        %629 = vst [vmem:[%s191 + $0x6c] sm:$0xf] %v597
        %630 = vst [vmem:[%s191 + $0x70] sm:$0xf] %v598
        %631 = vst [vmem:[%s191 + $0x74] sm:$0xf] %v599
        %632 = vst [vmem:[%s191 + $0x78] sm:$0xf] %v600
        %633 = vst [vmem:[%s191 + $0x7c] sm:$0xf] %v601
        %s634 = sand.u32 %s115, 1
        %s635 = scalar_lea.sflag [#allocation3], %s634
        %s636 = sand.u32 %s115, 1
        %s637 = smul.addr %s636, 128
        %s638 = scalar_lea.vmem [#allocation2], %s637
        // Predicated region
        $region37: #{matmul_bn.1} parent=35 // pred_check
          %p639 = pneg %p125
        $region38: #{matmul_bn.1} parent=35 // pred_check_branch
          %641 = sbr.rel (%p639) target = $region40
        $region39: #{matmul_bn.1} parent=35 // pred_region
          %s642 = smul.u32 32, %s18
          %644 = vsyncadd %s635, 0
          %s645 = smul.addr %s642, 4
          %s646 = scalar_lea.hbm %s4, %s645
          %s647 = sshll.u32 %s638, 4
          %s648 = int_to_ptr.vmem [resolvable:$true] %s647
          %s649 = sshll.u32 %s646, 4
          %s650 = int_to_ptr.hbm [resolvable:$true] %s649
          %655 = dma.vmem_to_hbm [thread:$0]  %s648, 2048, %s650, %s635, 64, 64, 4
        $region40: #{matmul_bn.1} parent=35 // pred_fallthru
          _
      $region36: #{matmul_bn.1} parent=5 // pred_fallthru
        _
      %p656 = scmp.le.s32.totalorder 2, %s13
      // Predicated region
      $region41: #{matmul_bn.1} parent=5 // pred_check
        %p657 = pneg %p656
      $region42: #{matmul_bn.1} parent=5 // pred_check_branch
        %659 = sbr.rel (%p657) target = $region44
      $region43: #{matmul_bn.1} parent=5 // pred_region
        %s660 = ssub.s32 %s13, 2
        // Predicated region
        $region45: #{matmul_bn.1} parent=43 // pred_check
          %p661 = pneg %p131
        $region46: #{matmul_bn.1} parent=43 // pred_check_branch
          %663 = sbr.rel (%p661) target = $region48
        $region47: #{matmul_bn.1} parent=43 // pred_region
          %s664 = sand.u32 %s116, 1
          %s665 = scalar_lea.sflag [#allocation3], %s664
          %s666 = sand.u32 %s116, 1
          %s667 = smul.addr %s666, 128
          %s668 = scalar_lea.vmem [#allocation2], %s667
          %670 = dma.done %s665, 2048
        $region48: #{matmul_bn.1} parent=43 // pred_fallthru
          _
      $region44: #{matmul_bn.1} parent=5 // pred_fallthru
        _
    $region6: #{matmul_bn.1} parent=1 // loop_footer
      %s17 = sadd.s32 1, %s13
    $region7: #{matmul_bn.1} parent=1 // loop_footer_branch
      %12 = sbr.rel target = $region3
    $region8: #{matmul_bn.1} parent=1 // loop_exit
      _
    %671 = vsyncpa [#allocation3], 1
    %s672 = scalar_lea.sflag [#allocation3], 1
    %673 = vsyncpa %s672, 1

</llo_original>
